<compile_context>
chip_gen: v7x
topology: tpu7x:2x2x1
jax: 0.10.0
libtpu: 0.0.40
codegen_flags: <defaults>
</compile_context>

<pallas_src>
import functools

import jax
import jax.numpy as jnp
from jax.experimental import pallas as pl
from jax.experimental.pallas import tpu as pltpu


_TARGET_BLOCK_BYTES = 4 * 1024 * 1024   # ~4 MiB of DMA'd input per grid step


def _round_up(x, m):
    return ((x + m - 1) // m) * m


@functools.lru_cache(maxsize=1)
def _vmem_capacity_bytes():
    try:
        return int(pltpu.get_tpu_info().vmem_capacity_bytes)
    except Exception:
        return 64 * 1024 * 1024          # conservative (v7x per-TC) fallback


def _vmem_limit_bytes():
    # ~57 MiB on 128 MiB parts (v5e/v6e), ~28 MiB on 64 MiB parts (v7x).
    return min(100 * 1024 * 1024, int(_vmem_capacity_bytes() * 0.45))


def _make_mse_kernel(apply_softmax, int_labels, any_partial, n_rows, nbp, tb):
    """Build an MSE kernel specialized (at trace time) for the input flavour.

    apply_softmax: softmax(x) along the class (lane) dim, else x is already probs.
    int_labels:    t_ref is a (TB, 1) int32 class-index column; the one-hot is
                   fused into the difference (never materialized, not in HBM).
    any_partial:   some blocks contain rows >= n_rows (partial last block and/or
                   phantom blocks of the 2-way split) and need masking.
    n_rows:        true batch size B.
    nbp:           batch blocks per partial (inner grid extent).
    tb:            rows per block.
    """

    def kernel(x_ref, t_ref, out_ref, acc_ref):
        c = pl.program_id(0)          # partial-sum / TensorCore index ("parallel")
        i = pl.program_id(1)          # batch-block index within the partial

        @pl.when(i == 0)
        def _init():
            acc_ref[0] = jnp.float32(0.0)   # running sum of squared errors
            acc_ref[1] = jnp.float32(0.0)   # Kahan compensation

        x = x_ref[...].astype(jnp.float32)  # (TB, C); upcast in-kernel only

        if apply_softmax:
            # numerically-stable softmax along the class (lane) dim
            # TODO(synk): on v7x the single EUP can bind before HBM; an optional
            # bf16 exp (v6e/v7x only, never v5e) would relieve it if accuracy allows.
            m = jnp.max(x, axis=1, keepdims=True)
            e = jnp.exp(x - m)
            p = e * pl.reciprocal(jnp.sum(e, axis=1, keepdims=True), approx=False)
        else:
            p = x

        if int_labels:
            # fused one-hot: d = p - onehot(label) without materializing the target
            col = jax.lax.broadcasted_iota(jnp.int32, p.shape, 1)
            d = jnp.where(col == t_ref[...], p - 1.0, p)
        else:
            d = p - t_ref[...].astype(jnp.float32)

        sq = d * d

        if any_partial:
            blk = c * nbp + i                       # unclamped global block index
            is_partial = (blk + 1) * tb > n_rows    # block overruns the true batch

            @pl.when(jnp.logical_not(is_partial))
            def _full():
                acc_ref[2] = jnp.sum(sq)

            @pl.when(is_partial)
            def _masked():
                row = blk * tb + jax.lax.broadcasted_iota(
                    jnp.int32, (sq.shape[0], 1), 0)
                # mask is applied to sq before the reduction, so NaN/Inf from
                # undefined padded rows never reaches the accumulator
                acc_ref[2] = jnp.sum(jnp.where(row < n_rows, sq, 0.0))

            bsum = acc_ref[2]
        else:
            bsum = jnp.sum(sq)

        # Kahan-compensated scalar accumulation (a few SMEM scalar ops per step)
        y = bsum - acc_ref[1]
        t_new = acc_ref[0] + y
        acc_ref[1] = (t_new - acc_ref[0]) - y
        acc_ref[0] = t_new

        @pl.when(i == nbp - 1)
        def _finish():
            out_ref[0, 0] = acc_ref[0]   # un-normalized per-partial sum

    return kernel


def _pick_block_rows(B, C, x_itemsize, t_row_vmem_bytes, t_row_hbm_bytes,
                     apply_softmax, block_rows=None):
    """Batch tile sized by bytes: ~4 MiB of input per step, within the VMEM budget."""
    pack = max(8, 32 // x_itemsize)               # sublane pack: 8 f32, 16 bf16, 32 int8
    if block_rows is None:
        c_vmem = _round_up(C, 128)                # lane padding of the (TB, C) block
        sizing_budget = int(_vmem_limit_bytes() * 0.8)
        # VMEM working set per block row:
        #   2x double-buffered x block + 2x double-buffered label block (lane-padded)
        #   + ~3 (softmax) / 2 f32 (TB, C) in-kernel temporaries
        n_temps = 3 if apply_softmax else 2
        per_row_vmem = (2 * c_vmem * x_itemsize
                        + 2 * t_row_vmem_bytes
                        + n_temps * c_vmem * 4)
        tb_vmem = sizing_budget // max(1, per_row_vmem)
        # ~4 MiB of HBM traffic per grid step amortizes the ~0.35 us/step overhead
        per_row_hbm = C * x_itemsize + t_row_hbm_bytes
        tb_hbm = _TARGET_BLOCK_BYTES // max(1, per_row_hbm)
        tb = min(tb_vmem, tb_hbm)
    else:
        tb = int(block_rows)
    tb = max(pack, (tb // pack) * pack)
    if tb >= B:
        return B                                   # single block; full-dim shape is legal
    return tb


def mse_loss(logits=None, labels=None, softmaxes=None, block_rows=None):
    """JAX/Pallas equivalent of the PyTorch MSELoss module's forward pass."""
    if logits is None and softmaxes is None:
        raise ValueError("Either logits or softmaxes must be provided")
    if labels is None:
        raise ValueError("labels must be provided")

    if logits is not None:
        x = jnp.asarray(logits)      # keep caller dtype through the DMA (bf16 stays bf16)
        apply_softmax = True
    else:
        x = jnp.asarray(softmaxes)
        apply_softmax = False

    labels = jnp.asarray(labels)
    B, C = x.shape

    int_labels = labels.ndim == 1
    if int_labels:
        t = labels.astype(jnp.int32).reshape(B, 1)   # index column; one-hot fused in-kernel
        t_cols = 1
        t_row_hbm_bytes = 4
        t_row_vmem_bytes = 128 * 4                   # (TB, 1) pads to 128 lanes in VMEM
    else:
        t = labels                                   # keep caller dtype; upcast in-kernel
        t_cols = C
        t_row_hbm_bytes = C * t.dtype.itemsize
        t_row_vmem_bytes = _round_up(C, 128) * t.dtype.itemsize

    # TODO(synk): for vocab-scale C where a single (TB, C) block exceeds VMEM, add a
    # second ("arbitrary", last) grid axis over C with online-softmax rescaling.
    tb = _pick_block_rows(B, C, x.dtype.itemsize, t_row_vmem_bytes, t_row_hbm_bytes,
                          apply_softmax, block_rows)
    nb = -(-B // tb)                       # total batch blocks
    num_partials = 2 if nb >= 2 else 1     # both TCs on v7x; back-to-back on 1-TC parts
    nbp = -(-nb // num_partials)           # blocks per partial
    any_partial = (B % tb != 0) or (num_partials * nbp != nb)

    kernel = _make_mse_kernel(apply_softmax, int_labels, any_partial, B, nbp, tb)

    def row_block_map(c, i):
        # clamp phantom blocks of the 2-way split (masked to zero in-kernel)
        return (jnp.minimum(c * nbp + i, nb - 1), 0)

    partials = pl.pallas_call(
        kernel,
        out_shape=jax.ShapeDtypeStruct((num_partials, 1), jnp.float32),
        grid_spec=pltpu.PrefetchScalarGridSpec(
            num_scalar_prefetch=0,
            grid=(num_partials, nbp),
            in_specs=[
                pl.BlockSpec((tb, C), row_block_map),
                pl.BlockSpec((tb, t_cols), row_block_map),
            ],
            # per-partial scalar output block: each core only writes its own row
            out_specs=pl.BlockSpec((1, 1), lambda c, i: (c, 0),
                                   memory_space=pltpu.SMEM),
            scratch_shapes=[pltpu.SMEM((3,), jnp.float32)],
        ),
        compiler_params=pltpu.CompilerParams(
            # leading axis shards across TensorCores on multi-TC parts (v7x);
            # trailing batch axis is a sequential accumulation axis.
            dimension_semantics=("parallel", "arbitrary"),
            vmem_limit_bytes=_vmem_limit_bytes(),
        ),
    )(x, t)

    # exact divisor computed in Python float64, applied once as an f32 scale
    return jnp.sum(partials) * jnp.float32(1.0 / float(B * C))


if __name__ == "__main__":
    key = jax.random.PRNGKey(0)
    k1, k2, k3 = jax.random.split(key, 3)

    B, C = 8, 32
    logits = jax.random.normal(k1, (B, C), dtype=jnp.float32)
    labels = jax.random.randint(k2, (B,), 0, C, dtype=jnp.int32)

    probs_ref = jax.nn.softmax(logits, axis=1)
    one_hot_ref = jax.nn.one_hot(labels, C, dtype=jnp.float32)
    ref = jnp.mean((probs_ref - one_hot_ref) ** 2)

    # 1) primary path: logits + integer class labels (softmax + fused in-kernel one-hot)
    loss = jax.block_until_ready(mse_loss(logits=logits, labels=labels))
    assert jnp.allclose(loss, ref, rtol=1e-5, atol=1e-6), (loss, ref)

    # 2) logits + dense one-hot targets
    loss2 = jax.block_until_ready(mse_loss(logits=logits, labels=one_hot_ref))
    assert jnp.allclose(loss2, ref, rtol=1e-5, atol=1e-6), (loss2, ref)

    # 3) softmaxes + integer labels (no wrapper-side one-hot materialization)
    loss3 = jax.block_until_ready(mse_loss(softmaxes=probs_ref, labels=labels))
    assert jnp.allclose(loss3, ref, rtol=1e-5, atol=1e-6), (loss3, ref)

    # 4) softmaxes + dense (soft) targets
    soft_t = jax.nn.softmax(jax.random.normal(k3, (B, C), dtype=jnp.float32), axis=1)
    ref4 = jnp.mean((probs_ref - soft_t) ** 2)
    loss4 = jax.block_until_ready(mse_loss(softmaxes=probs_ref, labels=soft_t))
    assert jnp.allclose(loss4, ref4, rtol=1e-5, atol=1e-6), (loss4, ref4)

    # 5) two-partial split + masked partial/phantom blocks (B=20, tb=8 -> 3 blocks)
    B2 = 20
    k4, k5 = jax.random.split(k3)
    logits2 = jax.random.normal(k4, (B2, C), dtype=jnp.float32)
    labels2 = jax.random.randint(k5, (B2,), 0, C, dtype=jnp.int32)
    ref5 = jnp.mean((jax.nn.softmax(logits2, axis=1)
                     - jax.nn.one_hot(labels2, C, dtype=jnp.float32)) ** 2)
    loss5 = jax.block_until_ready(
        mse_loss(logits=logits2, labels=labels2, block_rows=8))
    assert jnp.allclose(loss5, ref5, rtol=1e-5, atol=1e-6), (loss5, ref5)

    # 6) two-partial split with only full blocks (B=64, tb=16 -> 4 blocks, no masking)
    B3 = 64
    k6, k7 = jax.random.split(k5)
    logits3 = jax.random.normal(k6, (B3, C), dtype=jnp.float32)
    labels3 = jax.random.randint(k7, (B3,), 0, C, dtype=jnp.int32)
    ref6 = jnp.mean((jax.nn.softmax(logits3, axis=1)
                     - jax.nn.one_hot(labels3, C, dtype=jnp.float32)) ** 2)
    loss6 = jax.block_until_ready(
        mse_loss(logits=logits3, labels=labels3, block_rows=16))
    assert jnp.allclose(loss6, ref6, rtol=1e-5, atol=1e-6), (loss6, ref6)

    print("KERNEL_OK")
</pallas_src>

<mosaic_0001>
module attributes {stable_mosaic.version = 11 : i64} {
  func.func @kernel(%arg0: i32, %arg1: i32, %arg2: memref<8x32xf32, #tpu.memory_space<vmem>>, %arg3: memref<8x1xi32, #tpu.memory_space<vmem>>, %arg4: memref<1x1xf32, #tpu.memory_space<smem>>, %arg5: memref<3xf32, #tpu.memory_space<smem>>) attributes {dimension_semantics = [#tpu.dimension_semantics<parallel>, #tpu.dimension_semantics<arbitrary>], iteration_bounds = array<i64: 1, 1>, scalar_prefetch = 0 : i64, scratch_operands = 1 : i64, tpu.core_type = #tpu.core_type<tc>, window_params = [{transform_indices = @transform_0, window_bounds = array<i64: 8, 32>}, {transform_indices = @transform_1, window_bounds = array<i64: 8, 1>}, {transform_indices = @transform_2, window_bounds = array<i64: 1, 1>}]} {
    %c0_i32 = arith.constant 0 : i32
    %0 = arith.cmpi eq, %arg1, %c0_i32 : i32
    %1 = arith.extui %0 : i1 to i32
    %c0_i32_0 = arith.constant 0 : i32
    %2 = arith.cmpi ne, %1, %c0_i32_0 : i32
    scf.if %2 {
      %cst_13 = arith.constant 0.000000e+00 : f32
      %c0_14 = arith.constant 0 : index
      %38 = memref.load %arg5[%c0_14] : memref<3xf32, #tpu.memory_space<smem>>
      memref.store %cst_13, %arg5[%c0_14] : memref<3xf32, #tpu.memory_space<smem>>
      %cst_15 = arith.constant 0.000000e+00 : f32
      %c1_16 = arith.constant 1 : index
      %39 = memref.load %arg5[%c1_16] : memref<3xf32, #tpu.memory_space<smem>>
      memref.store %cst_15, %arg5[%c1_16] : memref<3xf32, #tpu.memory_space<smem>>
    } else {
    }
    %c0 = arith.constant 0 : index
    %c0_1 = arith.constant 0 : index
    %3 = vector.load %arg2[%c0, %c0_1] : memref<8x32xf32, #tpu.memory_space<vmem>>, vector<8x32xf32>
    %cst = arith.constant dense<0xFF800000> : vector<8xf32>
    %4 = vector.multi_reduction <maximumf>, %3, %cst [1] : vector<8x32xf32> to vector<8xf32>
    %5 = vector.shape_cast %4 : vector<8xf32> to vector<8x1xf32>
    %6 = vector.broadcast %5 : vector<8x1xf32> to vector<8x32xf32>
    %7 = arith.subf %3, %6 : vector<8x32xf32>
    %8 = math.exp %7 : vector<8x32xf32>
    %cst_2 = arith.constant dense<0.000000e+00> : vector<8xf32>
    %9 = vector.multi_reduction <add>, %8, %cst_2 [1] : vector<8x32xf32> to vector<8xf32>
    %10 = vector.shape_cast %9 : vector<8xf32> to vector<8x1xf32>
    %11 = tpu.reciprocal %10 : vector<8x1xf32> -> vector<8x1xf32>
    %12 = vector.broadcast %11 : vector<8x1xf32> to vector<8x32xf32>
    %13 = arith.mulf %8, %12 : vector<8x32xf32>
    %14 = tpu.iota {dimensions = array<i32: 1>} : vector<8x32xi32>
    %c0_3 = arith.constant 0 : index
    %c0_4 = arith.constant 0 : index
    %15 = vector.load %arg3[%c0_3, %c0_4] : memref<8x1xi32, #tpu.memory_space<vmem>>, vector<8x1xi32>
    %16 = vector.broadcast %15 : vector<8x1xi32> to vector<8x32xi32>
    %17 = arith.cmpi eq, %14, %16 : vector<8x32xi32>
    %cst_5 = arith.constant 1.000000e+00 : f32
    %18 = vector.broadcast %cst_5 : f32 to vector<8x32xf32>
    %19 = arith.subf %13, %18 : vector<8x32xf32>
    %20 = arith.select %17, %19, %13 : vector<8x32xi1>, vector<8x32xf32>
    %21 = arith.mulf %20, %20 : vector<8x32xf32>
    %22 = vector.shape_cast %21 : vector<8x32xf32> to vector<1x8x32xf32>
    %cst_6 = arith.constant dense<0.000000e+00> : vector<1xf32>
    %23 = vector.multi_reduction <add>, %22, %cst_6 [1, 2] : vector<1x8x32xf32> to vector<1xf32>
    %24 = vector.shape_cast %23 : vector<1xf32> to vector<1x1x1xf32>
    %25 = vector.extract %24[0, 0, 0] : f32 from vector<1x1x1xf32>
    %c1 = arith.constant 1 : index
    %26 = memref.load %arg5[%c1] : memref<3xf32, #tpu.memory_space<smem>>
    %27 = arith.subf %25, %26 : f32
    %c0_7 = arith.constant 0 : index
    %28 = memref.load %arg5[%c0_7] : memref<3xf32, #tpu.memory_space<smem>>
    %29 = arith.addf %28, %27 : f32
    %c0_8 = arith.constant 0 : index
    %30 = memref.load %arg5[%c0_8] : memref<3xf32, #tpu.memory_space<smem>>
    %31 = arith.subf %29, %30 : f32
    %32 = arith.subf %31, %27 : f32
    %c1_9 = arith.constant 1 : index
    %33 = memref.load %arg5[%c1_9] : memref<3xf32, #tpu.memory_space<smem>>
    memref.store %32, %arg5[%c1_9] : memref<3xf32, #tpu.memory_space<smem>>
    %c0_10 = arith.constant 0 : index
    %34 = memref.load %arg5[%c0_10] : memref<3xf32, #tpu.memory_space<smem>>
    memref.store %29, %arg5[%c0_10] : memref<3xf32, #tpu.memory_space<smem>>
    %c0_i32_11 = arith.constant 0 : i32
    %35 = arith.cmpi eq, %arg1, %c0_i32_11 : i32
    %36 = arith.extui %35 : i1 to i32
    %c0_i32_12 = arith.constant 0 : i32
    %37 = arith.cmpi ne, %36, %c0_i32_12 : i32
    scf.if %37 {
      %c0_13 = arith.constant 0 : index
      %38 = memref.load %arg5[%c0_13] : memref<3xf32, #tpu.memory_space<smem>>
      %c0_14 = arith.constant 0 : index
      %c0_15 = arith.constant 0 : index
      %39 = memref.load %arg4[%c0_14, %c0_15] : memref<1x1xf32, #tpu.memory_space<smem>>
      memref.store %38, %arg4[%c0_14, %c0_15] : memref<1x1xf32, #tpu.memory_space<smem>>
    } else {
    }
    return
  }
  func.func @transform_0(%arg0: i32, %arg1: i32) -> (i32, i32) {
    %c1_i32 = arith.constant 1 : i32
    %0 = arith.muli %arg0, %c1_i32 : i32
    %1 = arith.addi %0, %arg1 : i32
    %c0_i32 = arith.constant 0 : i32
    %2 = arith.minsi %1, %c0_i32 : i32
    %c0_i32_0 = arith.constant 0 : i32
    %c0_i32_1 = arith.constant 0 : i32
    return %2, %c0_i32_0 : i32, i32
  }
  func.func @transform_1(%arg0: i32, %arg1: i32) -> (i32, i32) {
    %c1_i32 = arith.constant 1 : i32
    %0 = arith.muli %arg0, %c1_i32 : i32
    %1 = arith.addi %0, %arg1 : i32
    %c0_i32 = arith.constant 0 : i32
    %2 = arith.minsi %1, %c0_i32 : i32
    %c0_i32_0 = arith.constant 0 : i32
    %c0_i32_1 = arith.constant 0 : i32
    return %2, %c0_i32_0 : i32, i32
  }
  func.func @transform_2(%arg0: i32, %arg1: i32) -> (i32, i32) {
    %c0_i32 = arith.constant 0 : i32
    %c0_i32_0 = arith.constant 0 : i32
    return %arg0, %c0_i32 : i32, i32
  }
}

</mosaic_0001>

<llo_original>
// kernel: tpu_custom_call.1
$region0: #{tpu_custom_call.1}
  #allocation0 [shape = 'u32[]', space=smem, size = 0x4, offset = 0x4, fixed_abs, tag = 'smem constant byte address 0x4 - core index']
  #allocation1 [shape = 'u32[144,128]{1,0:T(1,128)}', space=vmem, size = 0x12000, scoped, tag = 'internal scratch']
  #allocation2 [shape = 'f32[3]{0:T(128)}', space=smem, size = 0x200, scoped, tag = 'scratch operand']
  %s0 = inlined_call_operand.vmem [shape: f32[8,32], index: 0, kind: input, shape index: {}]
  %s1 = inlined_call_operand.vmem [shape: s32[8,1], index: 1, kind: input, shape index: {}]
  %s2 = inlined_call_operand.hbm [shape: f32[1,1], index: 2, kind: output, shape index: {}]
  %s3 = sld [smem:[#allocation0]]
  $region26: #{tpu_custom_call.1} parent=0
    _
  %s5 = ssub.s32 1, %s3
  %s6 = scalar_select 0, %s5, %s3
  $region1: #{tpu_custom_call.1} parent=0
    #allocation3 [shape = 'u8[512]{0}', space=smem, size = 0x200, scoped, tag = 'output window, operand 0, single buffered']
    #allocation4 [shape = 's32[1]{0}', space=sflag, size = 0x4, scoped, tag = 'scoped memory for tpu_custom_call.1']
    %7 = vsyncpa [#allocation4], 0
    // Predicated region
    $region2: #{tpu_custom_call.1} parent=1 // pred_check
      _
    $region3: #{tpu_custom_call.1} parent=1 // pred_check_branch
      %9 = sbr.rel (0) target = $region5
    $region4: #{tpu_custom_call.1} parent=1 // pred_region
      %s10 = sadd.s32 0, 0
      %p11 = scmp.lt.s32.totalorder %s10, 0
      %s12 = scalar_select %p11, %s10, 0
      %p13 = scmp.lt.s32.totalorder %s12, 0
      %s14 = scalar_select %p13, %s12, 0
      %s15 = smul.addr %s14, 8
      %s16 = scalar_lea.vmem %s0, %s15
      %s17 = sadd.s32 0, 0
      %p18 = scmp.lt.s32.totalorder %s17, 0
      %s19 = scalar_select %p18, %s17, 0
    $region5: #{tpu_custom_call.1} parent=1 // pred_fallthru
      _
    // Predicated region
    $region6: #{tpu_custom_call.1} parent=1 // pred_check
      _
    $region7: #{tpu_custom_call.1} parent=1 // pred_check_branch
      %21 = sbr.rel (0) target = $region9
    $region8: #{tpu_custom_call.1} parent=1 // pred_region
      %s22 = sadd.s32 0, 0
      %p23 = scmp.lt.s32.totalorder %s22, 0
      %s24 = scalar_select %p23, %s22, 0
      %p25 = scmp.lt.s32.totalorder %s24, 0
      %s26 = scalar_select %p25, %s24, 0
      %s27 = smul.addr %s26, 8
      %s28 = scalar_lea.vmem %s1, %s27
      %s29 = sadd.s32 0, 0
      %p30 = scmp.lt.s32.totalorder %s29, 0
      %s31 = scalar_select %p30, %s29, 0
    $region9: #{tpu_custom_call.1} parent=1 // pred_fallthru
      _
    %s32 = sadd.s32 0, 0
    %p33 = scmp.lt.s32.totalorder %s32, 0
    %s34 = scalar_select %p33, %s32, 0
    %p35 = scmp.lt.s32.totalorder %s34, 0
    %s36 = scalar_select %p35, %s34, 0
    %s37 = smul.addr %s36, 8
    %s38 = scalar_lea.vmem %s0, %s37
    %s39 = sadd.s32 0, 0
    %p40 = scmp.lt.s32.totalorder %s39, 0
    %s41 = scalar_select %p40, %s39, 0
    %p42 = scmp.lt.s32.totalorder %s41, 0
    %s43 = scalar_select %p42, %s41, 0
    %s44 = smul.addr %s43, 8
    %s45 = scalar_lea.vmem %s1, %s44
    %s46 = sadd.s32 0, 0
    %p47 = scmp.lt.s32.totalorder %s46, 0
    %s48 = scalar_select %p47, %s46, 0
    %p49 = scmp.lt.s32.totalorder %s48, 0
    %s50 = scalar_select %p49, %s48, 0
    %s51 = smul.addr %s50, 8
    %s52 = scalar_lea.vmem %s0, %s51
    %s53 = sadd.s32 0, 0
    %p54 = scmp.lt.s32.totalorder %s53, 0
    %s55 = scalar_select %p54, %s53, 0
    %s56 = sadd.s32 0, 0
    %p57 = scmp.lt.s32.totalorder %s56, 0
    %s58 = scalar_select %p57, %s56, 0
    %p59 = scmp.lt.s32.totalorder %s58, 0
    %s60 = scalar_select %p59, %s58, 0
    %s61 = smul.addr %s60, 8
    %s62 = scalar_lea.vmem %s1, %s61
    %s63 = sadd.s32 0, 0
    %p64 = scmp.lt.s32.totalorder %s63, 0
    %s65 = scalar_select %p64, %s63, 0
    %p66 = scmp.eq.s32.totalorder 0, 0
    // Predicated region
    $region10: #{tpu_custom_call.1} parent=1 // pred_check
      %p67 = pneg %p66
    $region11: #{tpu_custom_call.1} parent=1 // pred_check_branch
      %69 = sbr.rel (%p67) target = $region13
    $region12: #{tpu_custom_call.1} parent=1 // pred_region
      %s70 = scalar_lea.smem [#allocation2], 0
      %71 = sst [smem:[%s70]] 0.0
      %s72 = scalar_lea.smem [#allocation2], 1
      %73 = sst [smem:[%s72]] 0.0
    $region13: #{tpu_custom_call.1} parent=1 // pred_fallthru
      _
    %v74 = vld [vmem:[%s52] sm:$0xff]
    %vm75 = vcmask 261120
    %v76 = vsel %vm75, %v74, -inf
    %77 = vmax.xlane.f32.xlu0 %v76
    %v78 = vpop.xlane.xlu0 %77
    %v79 = vsub.f32 %v74, %v78
    %v80 = vmul.f32 %v79, 1.442695
    %v81 = vpow.pop %v80
    %v82 = vsel %vm75, %v81, 0.0
    %83 = vadd.xlane.f32.xlu0 %v82
    %v84 = vpop.xlane.xlu0 %83
    %v85 = vrcp.pop %v84
    %v86 = vmul.f32 %v81, %v85
    %v87 = vlaneseq
    %v88 = vand.u32 %v87, 127
    %v89 = vld [vmem:[%s62] sm:$0xff]
    %90 = vset.pattern.permute.xlu0 0
    %91 = vperm.xlu0 %90, %v89
    %v92 = vpop.permute.xlu0 %91
    %vm93 = vcmp.eq.s32.totalorder %v88, %v92
    %v94 = vsub.f32 %v86, 1.0
    %v95 = vsel %vm93, %v94, %v86
    %v96 = vmul.f32 %v95, %v95
    %v97 = vsel %vm75, %v96, 0.0
    %98 = vadd.xlane.f32.xlu0 %v97
    %v99 = vpop.xlane.xlu0 %98
    %v100 = vrot.slane %v99, 4
    %v101 = vadd.f32 %v99, %v100
    %v102 = vrot.slane %v101, 2
    %v103 = vadd.f32 %v101, %v102
    %v104 = vrot.slane %v103, 1
    %v105 = vadd.f32 %v103, %v104
    %s106 = vtos %v105
    %s107 = sld [smem:[#allocation2 + $0x1]]
    %s108 = ssub.f32 %s106, %s107
    %s109 = sld [smem:[#allocation2]]
    %s110 = sadd.f32 %s109, %s108
    %s111 = ssub.f32 %s110, %s109
    %s112 = ssub.f32 %s111, %s108
    %s113 = scalar_lea.smem [#allocation2], 1
    %114 = sst [smem:[%s113]] %s112
    %s115 = scalar_lea.smem [#allocation2], 0
    %116 = sst [smem:[%s115]] %s110
    // Predicated region
    $region14: #{tpu_custom_call.1} parent=1 // pred_check
      %p117 = pneg %p66
    $region15: #{tpu_custom_call.1} parent=1 // pred_check_branch
      %119 = sbr.rel (%p117) target = $region17
    $region16: #{tpu_custom_call.1} parent=1 // pred_region
      %s120 = sld [smem:[#allocation2]]
      %s121 = scalar_lea.smem [#allocation3], 0
      %122 = sst [smem:[%s121]] %s120
    $region17: #{tpu_custom_call.1} parent=1 // pred_fallthru
      _
    // Predicated region
    $region18: #{tpu_custom_call.1} parent=1 // pred_check
      _
    $region19: #{tpu_custom_call.1} parent=1 // pred_check_branch
      %124 = sbr.rel (0) target = $region21
    $region20: #{tpu_custom_call.1} parent=1 // pred_region
      %s126 = ssub.s32 16, 16
      %127 = vsyncadd [#allocation4], %s126
      %130 = dma.smem_to_hbm [#allocation3], 16, %s2, [#allocation4]
    $region21: #{tpu_custom_call.1} parent=1 // pred_fallthru
      _
    // Predicated region
    $region22: #{tpu_custom_call.1} parent=1 // pred_check
      _
    $region23: #{tpu_custom_call.1} parent=1 // pred_check_branch
      %132 = sbr.rel (0) target = $region25
    $region24: #{tpu_custom_call.1} parent=1 // pred_region
      %133 = dma.done [#allocation4], 16
    $region25: #{tpu_custom_call.1} parent=1 // pred_fallthru
      _
    %134 = sfence
    %135 = vsyncpa [#allocation4], 1

</llo_original>
